<compile_context>
chip_gen: v7x
topology: tpu7x:2x2x1
jax: 0.10.0
libtpu: 0.0.40
codegen_flags: <defaults>
</compile_context>

<pallas_src>
import functools

import jax
import jax.numpy as jnp
from jax.experimental import pallas as pl
from jax.experimental.pallas import tpu as pltpu

_MIB = 1024 * 1024


# ----------------------------- kernels ------------------------------------


def _ff_kernel_resident(x_ref, w1_ref, b1_ref, w2_ref, b2_ref, o_ref):
    # x_ref: (tm, Dp)  w1_ref: (Dp, Hp)  b1_ref: (1, Hp)
    # w2_ref: (Hp, Dp) b2_ref: (1, Dp)   o_ref: (tm, Dp)
    # Weights stay resident in VMEM (constant index_map); single dot chain,
    # f32 accumulation via preferred_element_type, no scratch needed.
    h = jnp.dot(x_ref[...], w1_ref[...], preferred_element_type=jnp.float32)
    h = h + b1_ref[...].astype(jnp.float32)
    h = h * jax.nn.sigmoid(h)                      # Swish (f32 on EUP/VPU)
    out = jnp.dot(h.astype(w2_ref.dtype), w2_ref[...],
                  preferred_element_type=jnp.float32)
    o_ref[...] = (out + b2_ref[...].astype(jnp.float32)).astype(o_ref.dtype)


def _ff_kernel_stream(x_ref, w1_ref, b1_ref, w2_ref, b2_ref, o_ref, acc_ref):
    # x_ref: (tm, Dp)  w1_ref: (Dp, th)  b1_ref: (1, th)
    # w2_ref: (th, Dp) b2_ref: (1, Dp)   o_ref: (tm, Dp)  acc_ref: (tm, Dp) f32
    h_idx = pl.program_id(1)

    @pl.when(h_idx == 0)
    def _():
        acc_ref[...] = jnp.zeros_like(acc_ref)

    # First linear (native-dtype MXU matmul, f32 accumulate) + Swish.
    h = jnp.dot(x_ref[...], w1_ref[...], preferred_element_type=jnp.float32)
    h = h + b1_ref[...].astype(jnp.float32)
    h = h * jax.nn.sigmoid(h)

    # Partial second linear back to dim; accumulate over the hidden tiles.
    acc_ref[...] += jnp.dot(h.astype(w2_ref.dtype), w2_ref[...],
                            preferred_element_type=jnp.float32)

    @pl.when(h_idx == pl.num_programs(1) - 1)
    def _():
        o_ref[...] = (acc_ref[...] + b2_ref[...].astype(jnp.float32)
                      ).astype(o_ref.dtype)


# --------------------------- tiling helpers --------------------------------


def _round_up(x, m):
    return ((x + m - 1) // m) * m


def _sublane(dtype):
    # f32 -> 8, bf16 -> 16, int8/fp8 -> 32 rows per vreg sublane tile.
    return max(8, 32 // jnp.dtype(dtype).itemsize)


def _vmem_capacity_bytes():
    try:
        return int(pltpu.get_tpu_info().vmem_capacity_bytes)
    except Exception:
        return 64 * _MIB            # conservative default (v7x per-TC VMEM)


def _vmem_resident(tm, d_pad, h_pad, itemsize):
    w = 2 * 2 * d_pad * h_pad * itemsize          # W1 + W2 (count double-buffered)
    x_io = 2 * tm * d_pad * itemsize              # x tile (double buffered)
    o_io = 2 * tm * d_pad * itemsize              # out tile
    bias = 2 * (h_pad + d_pad) * itemsize
    hid = tm * h_pad * (4 + itemsize)             # f32 swish result + cast copy
    margin = 2 * _MIB                             # compiler internal scratch
    return w + x_io + o_io + bias + hid + margin


def _vmem_stream(tm, th, d_pad, itemsize):
    acc = tm * d_pad * 4                          # f32 accumulator scratch
    x_io = 2 * tm * d_pad * itemsize
    o_io = 2 * tm * d_pad * itemsize
    w1_t = 2 * d_pad * th * itemsize
    w2_t = 2 * th * d_pad * itemsize
    bias = 2 * (th + d_pad) * itemsize
    hid = tm * th * (4 + itemsize)                # f32 swish result + cast copy
    margin = 2 * _MIB
    return acc + x_io + o_io + w1_t + w2_t + bias + hid + margin


def _pick_tiles(n, d_pad, h_pad, itemsize, sublane, budget):
    """Returns (weight_resident, tm, th)."""
    n_al = _round_up(max(n, 1), sublane)

    # Row-tile cap: large tiles raise arithmetic intensity, but keep >= 2 row
    # blocks when the row count allows so the "parallel" axis can shard across
    # the two v7x TensorCores.
    tm_cap = min(1024, n_al)
    if n_al >= 2 * sublane:
        tm_cap = min(tm_cap, _round_up((n_al + 1) // 2, sublane))
    tm_cap = max(tm_cap, sublane)

    # 1) Weight-resident fast path: whole W1/W2 live in VMEM, no H reduction.
    tm = tm_cap
    while True:
        if _vmem_resident(tm, d_pad, h_pad, itemsize) <= budget:
            return True, tm, h_pad
        nxt = ((tm // 2) // sublane) * sublane
        if nxt < sublane or nxt >= tm:
            break
        tm = nxt

    # 2) Streaming fallback: H is an "arbitrary" reduction grid axis.
    tm = tm_cap
    th = min(512, h_pad)
    th = min(h_pad, _round_up(th, 256 if h_pad % 256 == 0 else 128))
    while _vmem_stream(tm, th, d_pad, itemsize) > budget and th % 256 == 0:
        th //= 2
    while _vmem_stream(tm, th, d_pad, itemsize) > budget:
        nxt = ((tm // 2) // sublane) * sublane
        if nxt < sublane or nxt >= tm:
            break
        tm = nxt
    return False, tm, th


# ------------------------------ wrapper -------------------------------------


@functools.partial(jax.jit, static_argnames=("block_rows", "block_hidden"))
def feed_forward(x, w1, b1, w2, b2, *, block_rows=None, block_hidden=None):
    """x: (batch, seq, dim) -> (batch, seq, dim).  Weights stored [in, out]."""
    B, T, D = x.shape
    H = w1.shape[1]
    N = B * T
    dtype = x.dtype
    itemsize = jnp.dtype(dtype).itemsize
    sublane = _sublane(dtype)

    cap = _vmem_capacity_bytes()
    budget = int(cap * 0.75)

    D_pad = _round_up(D, 128)                     # lane-dense output slab
    H_pad0 = _round_up(H, 128)
    resident, tm, th = _pick_tiles(N, D_pad, H_pad0, itemsize, sublane, budget)

    # Validate / clamp user overrides against sublane & lane alignment.
    if block_rows is not None:
        tm = max(sublane, _round_up(int(block_rows), sublane))
    if block_hidden is not None:
        th = max(128, _round_up(int(block_hidden), 128))
        resident = False                          # explicit hidden tiling => stream

    if resident:
        H_pad = H_pad0
        est = _vmem_resident(tm, D_pad, H_pad, itemsize)
    else:
        th = min(th, H_pad0)
        H_pad = _round_up(H, th)
        est = _vmem_stream(tm, th, D_pad, itemsize)

    N_pad = _round_up(N, tm)

    # Zero-pad only when not already tile-aligned (padding is exact: padded
    # hidden columns give h=0, swish(0)=0, and the padded W2 rows are zero).
    x2 = x.reshape(N, D)
    if (N_pad, D_pad) != (N, D):
        x2 = jnp.pad(x2, ((0, N_pad - N), (0, D_pad - D)))
    w1p = w1 if (D_pad, H_pad) == (D, H) else jnp.pad(
        w1, ((0, D_pad - D), (0, H_pad - H)))
    b1p = b1.reshape(1, H)
    if H_pad != H:
        b1p = jnp.pad(b1p, ((0, 0), (0, H_pad - H)))
    w2p = w2 if (H_pad, D_pad) == (H, D) else jnp.pad(
        w2, ((0, H_pad - H), (0, D_pad - D)))
    b2p = b2.reshape(1, D)
    if D_pad != D:
        b2p = jnp.pad(b2p, ((0, 0), (0, D_pad - D)))

    vmem_limit = int(min(cap - 4 * _MIB, max(32 * _MIB, int(est * 1.4))))

    if resident:
        out2 = pl.pallas_call(
            _ff_kernel_resident,
            out_shape=jax.ShapeDtypeStruct((N_pad, D_pad), dtype),
            grid_spec=pltpu.PrefetchScalarGridSpec(
                num_scalar_prefetch=0,
                grid=(N_pad // tm,),
                in_specs=[
                    pl.BlockSpec((tm, D_pad), lambda i: (i, 0)),      # x rows
                    pl.BlockSpec((D_pad, H_pad), lambda i: (0, 0)),   # W1 (resident)
                    pl.BlockSpec((1, H_pad), lambda i: (0, 0)),       # b1
                    pl.BlockSpec((H_pad, D_pad), lambda i: (0, 0)),   # W2 (resident)
                    pl.BlockSpec((1, D_pad), lambda i: (0, 0)),       # b2
                ],
                out_specs=pl.BlockSpec((tm, D_pad), lambda i: (i, 0)),
            ),
            compiler_params=pltpu.CompilerParams(
                dimension_semantics=("parallel",),
                vmem_limit_bytes=vmem_limit),
        )(x2, w1p, b1p, w2p, b2p)
    else:
        out2 = pl.pallas_call(
            _ff_kernel_stream,
            out_shape=jax.ShapeDtypeStruct((N_pad, D_pad), dtype),
            grid_spec=pltpu.PrefetchScalarGridSpec(
                num_scalar_prefetch=0,
                grid=(N_pad // tm, H_pad // th),
                in_specs=[
                    pl.BlockSpec((tm, D_pad), lambda i, h: (i, 0)),   # x rows
                    pl.BlockSpec((D_pad, th), lambda i, h: (0, h)),   # W1 h-tile
                    pl.BlockSpec((1, th), lambda i, h: (0, h)),       # b1 h-tile
                    pl.BlockSpec((th, D_pad), lambda i, h: (h, 0)),   # W2 h-tile
                    pl.BlockSpec((1, D_pad), lambda i, h: (0, 0)),    # b2
                ],
                out_specs=pl.BlockSpec((tm, D_pad), lambda i, h: (i, 0)),
                scratch_shapes=[pltpu.VMEM((tm, D_pad), jnp.float32)],
            ),
            compiler_params=pltpu.CompilerParams(
                dimension_semantics=("parallel", "arbitrary"),
                vmem_limit_bytes=vmem_limit),
        )(x2, w1p, b1p, w2p, b2p)

    if (N_pad, D_pad) != (N, D):
        out2 = out2[:N, :D]
    return out2.reshape(B, T, D)


def init_params(key, dim, mult=4, dtype=jnp.float32):
    """PyTorch-Linear-style init (uniform +/- 1/sqrt(fan_in)); weights [in, out]."""
    hidden = dim * mult
    k1, k2, k3, k4 = jax.random.split(key, 4)
    bound1 = 1.0 / (dim ** 0.5)
    bound2 = 1.0 / (hidden ** 0.5)
    w1 = jax.random.uniform(k1, (dim, hidden), dtype, -bound1, bound1)
    b1 = jax.random.uniform(k2, (hidden,), dtype, -bound1, bound1)
    w2 = jax.random.uniform(k3, (hidden, dim), dtype, -bound2, bound2)
    b2 = jax.random.uniform(k4, (dim,), dtype, -bound2, bound2)
    return w1, b1, w2, b2


if __name__ == "__main__":
    key = jax.random.PRNGKey(0)
    kx, kp = jax.random.split(key)

    batch, seq, dim, mult = 2, 8, 128, 4          # hidden = 512
    x = jax.random.normal(kx, (batch, seq, dim), jnp.float32)
    w1, b1, w2, b2 = init_params(kp, dim, mult)

    # Pure-JAX reference.
    h_ref = x @ w1 + b1
    h_ref = h_ref * jax.nn.sigmoid(h_ref)
    ref = h_ref @ w2 + b2

    # 1) f32, default tile picker -> weight-resident fast path.
    out = jax.block_until_ready(feed_forward(x, w1, b1, w2, b2))
    assert out.shape == (batch, seq, dim)
    assert jnp.allclose(out, ref, atol=1e-4, rtol=1e-4)

    # 2) f32 with forced small tiles -> exercises the streaming H-reduction
    #    accumulator path and row tiling.
    out_s = jax.block_until_ready(
        feed_forward(x, w1, b1, w2, b2, block_rows=8, block_hidden=256))
    assert jnp.allclose(out_s, ref, atol=1e-4, rtol=1e-4)

    # 3) bf16 end-to-end (full-rate MXU inputs, f32 accumulation), default picker.
    xb = x.astype(jnp.bfloat16)
    out_bf16 = jax.block_until_ready(
        feed_forward(xb, w1.astype(jnp.bfloat16), b1.astype(jnp.bfloat16),
                     w2.astype(jnp.bfloat16), b2.astype(jnp.bfloat16)))
    assert out_bf16.shape == (batch, seq, dim)
    assert jnp.allclose(out_bf16.astype(jnp.float32), ref, atol=1e-1, rtol=1e-1)

    print("KERNEL_OK")
</pallas_src>

<mosaic_0001>
module attributes {stable_mosaic.version = 11 : i64} {
  func.func @_ff_kernel_resident(%arg0: i32, %arg1: memref<8x128xf32, #tpu.memory_space<vmem>>, %arg2: memref<128x512xf32, #tpu.memory_space<vmem>>, %arg3: memref<1x512xf32, #tpu.memory_space<vmem>>, %arg4: memref<512x128xf32, #tpu.memory_space<vmem>>, %arg5: memref<1x128xf32, #tpu.memory_space<vmem>>, %arg6: memref<8x128xf32, #tpu.memory_space<vmem>>) attributes {dimension_semantics = [#tpu.dimension_semantics<parallel>], iteration_bounds = array<i64: 2>, scalar_prefetch = 0 : i64, scratch_operands = 0 : i64, tpu.core_type = #tpu.core_type<tc>, window_params = [{transform_indices = @transform_0, window_bounds = array<i64: 8, 128>}, {pipeline_mode = #tpu.pipeline_mode<synchronous>, transform_indices = @transform_1, window_bounds = array<i64: 128, 512>}, {pipeline_mode = #tpu.pipeline_mode<synchronous>, transform_indices = @transform_2, window_bounds = array<i64: 1, 512>}, {pipeline_mode = #tpu.pipeline_mode<synchronous>, transform_indices = @transform_3, window_bounds = array<i64: 512, 128>}, {pipeline_mode = #tpu.pipeline_mode<synchronous>, transform_indices = @transform_4, window_bounds = array<i64: 1, 128>}, {transform_indices = @transform_5, window_bounds = array<i64: 8, 128>}]} {
    %c0 = arith.constant 0 : index
    %c0_0 = arith.constant 0 : index
    %0 = vector.load %arg1[%c0, %c0_0] : memref<8x128xf32, #tpu.memory_space<vmem>>, vector<8x128xf32>
    %c0_1 = arith.constant 0 : index
    %c0_2 = arith.constant 0 : index
    %1 = vector.load %arg2[%c0_1, %c0_2] : memref<128x512xf32, #tpu.memory_space<vmem>>, vector<128x512xf32>
    %cst = arith.constant dense<0.000000e+00> : vector<8x512xf32>
    %2 = tpu.matmul %0, %1, %cst {dimension_numbers = #tpu.dot_dimension_numbers<[1], [0], [0], [1], [0, 0, 1, 1], [], []>} : vector<8x128xf32>, vector<128x512xf32>, vector<8x512xf32> -> vector<8x512xf32>
    %c0_3 = arith.constant 0 : index
    %c0_4 = arith.constant 0 : index
    %3 = vector.load %arg3[%c0_3, %c0_4] : memref<1x512xf32, #tpu.memory_space<vmem>>, vector<1x512xf32>
    %4 = vector.broadcast %3 : vector<1x512xf32> to vector<8x512xf32>
    %5 = arith.addf %2, %4 : vector<8x512xf32>
    %6 = arith.negf %5 : vector<8x512xf32>
    %7 = math.exp %6 : vector<8x512xf32>
    %cst_5 = arith.constant 1.000000e+00 : f32
    %8 = vector.broadcast %cst_5 : f32 to vector<8x512xf32>
    %9 = arith.addf %8, %7 : vector<8x512xf32>
    %10 = arith.divf %8, %9 : vector<8x512xf32>
    %11 = arith.mulf %5, %10 : vector<8x512xf32>
    %c0_6 = arith.constant 0 : index
    %c0_7 = arith.constant 0 : index
    %12 = vector.load %arg4[%c0_6, %c0_7] : memref<512x128xf32, #tpu.memory_space<vmem>>, vector<512x128xf32>
    %cst_8 = arith.constant dense<0.000000e+00> : vector<8x128xf32>
    %13 = tpu.matmul %11, %12, %cst_8 {dimension_numbers = #tpu.dot_dimension_numbers<[1], [0], [0], [1], [0, 0, 1, 1], [], []>} : vector<8x512xf32>, vector<512x128xf32>, vector<8x128xf32> -> vector<8x128xf32>
    %c0_9 = arith.constant 0 : index
    %c0_10 = arith.constant 0 : index
    %14 = vector.load %arg5[%c0_9, %c0_10] : memref<1x128xf32, #tpu.memory_space<vmem>>, vector<1x128xf32>
    %15 = vector.broadcast %14 : vector<1x128xf32> to vector<8x128xf32>
    %16 = arith.addf %13, %15 : vector<8x128xf32>
    %c0_11 = arith.constant 0 : index
    %c0_12 = arith.constant 0 : index
    %17 = vector.load %arg6[%c0_11, %c0_12] : memref<8x128xf32, #tpu.memory_space<vmem>>, vector<8x128xf32>
    tpu.vector_store %arg6[%c0_11, %c0_12], %16 {strides = array<i32>} : memref<8x128xf32, #tpu.memory_space<vmem>>, vector<8x128xf32>,
    return
  }
  func.func @transform_0(%arg0: i32) -> (i32, i32) {
    %c0_i32 = arith.constant 0 : i32
    %c0_i32_0 = arith.constant 0 : i32
    return %arg0, %c0_i32 : i32, i32
  }
  func.func @transform_1(%arg0: i32) -> (i32, i32) {
    %c0_i32 = arith.constant 0 : i32
    %c0_i32_0 = arith.constant 0 : i32
    %c0_i32_1 = arith.constant 0 : i32
    return %c0_i32, %c0_i32_0 : i32, i32
  }
  func.func @transform_2(%arg0: i32) -> (i32, i32) {
    %c0_i32 = arith.constant 0 : i32
    %c0_i32_0 = arith.constant 0 : i32
    %c0_i32_1 = arith.constant 0 : i32
    return %c0_i32, %c0_i32_0 : i32, i32
  }
  func.func @transform_3(%arg0: i32) -> (i32, i32) {
    %c0_i32 = arith.constant 0 : i32
    %c0_i32_0 = arith.constant 0 : i32
    %c0_i32_1 = arith.constant 0 : i32
    return %c0_i32, %c0_i32_0 : i32, i32
  }
  func.func @transform_4(%arg0: i32) -> (i32, i32) {
    %c0_i32 = arith.constant 0 : i32
    %c0_i32_0 = arith.constant 0 : i32
    %c0_i32_1 = arith.constant 0 : i32
    return %c0_i32, %c0_i32_0 : i32, i32
  }
  func.func @transform_5(%arg0: i32) -> (i32, i32) {
    %c0_i32 = arith.constant 0 : i32
    %c0_i32_0 = arith.constant 0 : i32
    return %arg0, %c0_i32 : i32, i32
  }
}

</mosaic_0001>

<llo_original>
// kernel: feed_forward.1
$region0: #{feed_forward.1}
  #allocation0 [shape = 'u32[]', space=smem, size = 0x4, offset = 0x4, fixed_abs, tag = 'smem constant byte address 0x4 - core index']
  #allocation1 [shape = 'u32[144,128]{1,0:T(1,128)}', space=vmem, size = 0x12000, scoped, tag = 'internal scratch']
  %s0 = inlined_call_operand.hbm [shape: f32[16,128], index: 0, kind: input, shape index: {}]
  %s1 = inlined_call_operand.hbm [shape: f32[128,512], index: 1, kind: input, shape index: {}]
  %s2 = inlined_call_operand.vmem [shape: f32[1,512], index: 2, kind: input, shape index: {}]
  %s3 = inlined_call_operand.hbm [shape: f32[512,128], index: 3, kind: input, shape index: {}]
  %s4 = inlined_call_operand.vmem [shape: f32[1,128], index: 4, kind: input, shape index: {}]
  %s5 = inlined_call_operand.hbm [shape: f32[16,128], index: 5, kind: output, shape index: {}]
  %s6 = sld [smem:[#allocation0]]
  $region65: #{feed_forward.1} parent=0
    _
  %s8 = ssub.s32 1, %s6
  %s9 = scalar_select 0, %s8, %s6
  $region1: #{feed_forward.1} parent=0
    #allocation2 [shape = 'u8[8192]{0}', space=vmem, size = 0x2000, scoped, tag = 'input window, operand 0']
    #allocation3 [shape = 's32[2]{0}', space=sflag, size = 0x8, scoped, tag = 'scoped memory for feed_forward.1']
    #allocation4 [shape = 's32[2]{0}', space=sflag, size = 0x8, scoped, tag = 'scoped memory for feed_forward.1']
    #allocation5 [shape = 'u8[262144]{0}', space=vmem, size = 0x40000, scoped, tag = 'input window, operand 1, single buffered']
    #allocation6 [shape = 's32[1]{0}', space=sflag, size = 0x4, scoped, tag = 'scoped memory for feed_forward.1']
    #allocation7 [shape = 'u8[262144]{0}', space=vmem, size = 0x40000, scoped, tag = 'input window, operand 3, single buffered']
    #allocation8 [shape = 'u8[8192]{0}', space=vmem, size = 0x2000, scoped, tag = 'output window, operand 0']
    %10 = vsyncpa [#allocation3], 0
    %s11 = scalar_lea.sflag [#allocation3], 1
    %12 = vsyncpa %s11, 0
    %13 = vsyncpa [#allocation6], 0
    %14 = vsyncpa [#allocation4], 0
    %s15 = scalar_lea.sflag [#allocation4], 1
    %16 = vsyncpa %s15, 0
    loop: start=0, step=1, limit=4
    $region2: #{feed_forward.1} parent=1 // loop_pre_header
      _
    $region3: #{feed_forward.1} parent=1 // loop_header
      %s18 = sphi 0, %s22
      %p19 = scmp.ge.s32.totalorder %s18, 4
      %s28 = sphi 0, %s30
      %s31 = sphi 0, %s28
      %s32 = sphi 0, %s31
      %s48 = sphi 0, %s32
      %s52 = sphi 0, %s52
      %s54 = sphi 0, %s52
      %s55 = sphi 0, %s54
      %s69 = sphi 0, %s55
      %s73 = sphi 0, %s73
      %s75 = sphi 0, %s73
      %s76 = sphi 0, %s75
      %s90 = sphi 0, %s76
      %s94 = sphi 0, %s94
      %s96 = sphi 0, %s94
      %s97 = sphi 0, %s96
      %s111 = sphi 0, %s97
      %s115 = sphi 0, %s115
      %s117 = sphi 0, %s115
      %s118 = sphi 0, %s117
      %s132 = sphi 0, %s118
      %s138 = sphi 0, %s140
      %s141 = sphi 0, %s138
      %s142 = sphi 0, %s141
      %s158 = sphi 0, %s142
    $region4: #{feed_forward.1} parent=1 // loop_header_branch
      %21 = sbr.rel (%p19) target = $region8
    $region5: #{feed_forward.1} parent=1 // loop_body
      %s23 = ssub.s32 %s18, 1
      %s24 = ssub.s32 %s18, 2
      %s25 = sadd.s32 %s18, 1
      %s26 = ssub.s32 %s18, %s25
      %p27 = scmp.eq.s32.totalorder %s26, 0
      %s29 = sadd.s32 %s28, 1
      %s30 = scalar_select %p27, %s28, %s29
      %p33 = pneg %p27
      %p34 = scmp.eq.s32.totalorder %s18, 1
      %p35 = por %p33, %p34
      %p36 = scmp.ne.s32.totalorder %s28, %s31
      %p37 = scmp.eq.s32.totalorder %s18, 0
      %p38 = por %p36, %p37
      %p39 = scmp.ne.s32.totalorder %s28, %s31
      %p40 = scmp.eq.s32.totalorder %s23, 1
      %p41 = por %p39, %p40
      %p42 = scmp.ne.s32.totalorder %s31, %s32
      %p43 = scmp.eq.s32.totalorder %s23, 0
      %p44 = por %p42, %p43
      %p45 = scmp.ne.s32.totalorder %s31, %s32
      %p46 = scmp.eq.s32.totalorder %s24, 1
      %p47 = por %p45, %p46
      %p49 = scmp.ne.s32.totalorder %s32, %s48
      %p50 = scmp.eq.s32.totalorder %s24, 0
      %p51 = por %p49, %p50
      %s53 = sadd.s32 %s52, 1
      %p56 = scmp.eq.s32.totalorder %s18, 1
      %p57 = scmp.ne.s32.totalorder %s52, %s54
      %p58 = scmp.eq.s32.totalorder %s18, 0
      %p59 = por %p57, %p58
      %p60 = scmp.ne.s32.totalorder %s52, %s54
      %p61 = scmp.eq.s32.totalorder %s23, 1
      %p62 = por %p60, %p61
      %p63 = scmp.ne.s32.totalorder %s54, %s55
      %p64 = scmp.eq.s32.totalorder %s23, 0
      %p65 = por %p63, %p64
      %p66 = scmp.ne.s32.totalorder %s54, %s55
      %p67 = scmp.eq.s32.totalorder %s24, 1
      %p68 = por %p66, %p67
      %p70 = scmp.ne.s32.totalorder %s55, %s69
      %p71 = scmp.eq.s32.totalorder %s24, 0
      %p72 = por %p70, %p71
      %s74 = sadd.s32 %s73, 1
      %p77 = scmp.eq.s32.totalorder %s18, 1
      %p78 = scmp.ne.s32.totalorder %s73, %s75
      %p79 = scmp.eq.s32.totalorder %s18, 0
      %p80 = por %p78, %p79
      %p81 = scmp.ne.s32.totalorder %s73, %s75
      %p82 = scmp.eq.s32.totalorder %s23, 1
      %p83 = por %p81, %p82
      %p84 = scmp.ne.s32.totalorder %s75, %s76
      %p85 = scmp.eq.s32.totalorder %s23, 0
      %p86 = por %p84, %p85
      %p87 = scmp.ne.s32.totalorder %s75, %s76
      %p88 = scmp.eq.s32.totalorder %s24, 1
      %p89 = por %p87, %p88
      %p91 = scmp.ne.s32.totalorder %s76, %s90
      %p92 = scmp.eq.s32.totalorder %s24, 0
      %p93 = por %p91, %p92
      %s95 = sadd.s32 %s94, 1
      %p98 = scmp.eq.s32.totalorder %s18, 1
      %p99 = scmp.ne.s32.totalorder %s94, %s96
      %p100 = scmp.eq.s32.totalorder %s18, 0
      %p101 = por %p99, %p100
      %p102 = scmp.ne.s32.totalorder %s94, %s96
      %p103 = scmp.eq.s32.totalorder %s23, 1
      %p104 = por %p102, %p103
      %p105 = scmp.ne.s32.totalorder %s96, %s97
      %p106 = scmp.eq.s32.totalorder %s23, 0
      %p107 = por %p105, %p106
      %p108 = scmp.ne.s32.totalorder %s96, %s97
      %p109 = scmp.eq.s32.totalorder %s24, 1
      %p110 = por %p108, %p109
      %p112 = scmp.ne.s32.totalorder %s97, %s111
      %p113 = scmp.eq.s32.totalorder %s24, 0
      %p114 = por %p112, %p113
      %s116 = sadd.s32 %s115, 1
      %p119 = scmp.eq.s32.totalorder %s18, 1
      %p120 = scmp.ne.s32.totalorder %s115, %s117
      %p121 = scmp.eq.s32.totalorder %s18, 0
      %p122 = por %p120, %p121
      %p123 = scmp.ne.s32.totalorder %s115, %s117
      %p124 = scmp.eq.s32.totalorder %s23, 1
      %p125 = por %p123, %p124
      %p126 = scmp.ne.s32.totalorder %s117, %s118
      %p127 = scmp.eq.s32.totalorder %s23, 0
      %p128 = por %p126, %p127
      %p129 = scmp.ne.s32.totalorder %s117, %s118
      %p130 = scmp.eq.s32.totalorder %s24, 1
      %p131 = por %p129, %p130
      %p133 = scmp.ne.s32.totalorder %s118, %s132
      %p134 = scmp.eq.s32.totalorder %s24, 0
      %p135 = por %p133, %p134
      %s136 = ssub.s32 %s18, %s25
      %p137 = scmp.eq.s32.totalorder %s136, 0
      %s139 = sadd.s32 %s138, 1
      %s140 = scalar_select %p137, %s138, %s139
      %p143 = pneg %p137
      %p144 = scmp.eq.s32.totalorder %s18, 1
      %p145 = por %p143, %p144
      %p146 = scmp.ne.s32.totalorder %s138, %s141
      %p147 = scmp.eq.s32.totalorder %s18, 0
      %p148 = por %p146, %p147
      %p149 = scmp.ne.s32.totalorder %s138, %s141
      %p150 = scmp.eq.s32.totalorder %s23, 1
      %p151 = por %p149, %p150
      %p152 = scmp.ne.s32.totalorder %s141, %s142
      %p153 = scmp.eq.s32.totalorder %s23, 0
      %p154 = por %p152, %p153
      %p155 = scmp.ne.s32.totalorder %s141, %s142
      %p156 = scmp.eq.s32.totalorder %s24, 1
      %p157 = por %p155, %p156
      %p159 = scmp.ne.s32.totalorder %s142, %s158
      %p160 = scmp.eq.s32.totalorder %s24, 0
      %p161 = por %p159, %p160
      %p162 = scmp.le.s32.totalorder 1, %s18
      %p163 = scmp.lt.s32.totalorder %s18, 3
      %p164 = pnand %p162, %p163
      %p165 = pneg %p164
      // Predicated region
      $region9: #{feed_forward.1} parent=5 // pred_check
        _
      $region10: #{feed_forward.1} parent=5 // pred_check_branch
        %167 = sbr.rel (%p164) target = $region12
      $region11: #{feed_forward.1} parent=5 // pred_region
        %s168 = ssub.s32 %s18, 1
        // Predicated region
        $region13: #{feed_forward.1} parent=11 // pred_check
          %p169 = pneg %p65
        $region14: #{feed_forward.1} parent=11 // pred_check_branch
          %171 = sbr.rel (%p169) target = $region16
        $region15: #{feed_forward.1} parent=11 // pred_region
          %s173 = ssub.s32 8192, 8192
          %174 = vsyncadd [#allocation6], %s173
          %s175 = sshll.u32 [#allocation5], 4
          %s176 = int_to_ptr.vmem [resolvable:$true] %s175
          %181 = dma.hbm_to_vmem [thread:$0]  %s1, 8192, %s176, [#allocation6], 512, 512, 32
        $region16: #{feed_forward.1} parent=11 // pred_fallthru
          _
        // Predicated region
        $region17: #{feed_forward.1} parent=11 // pred_check
          %p182 = pneg %p86
        $region18: #{feed_forward.1} parent=11 // pred_check_branch
          %184 = sbr.rel (%p182) target = $region20
        $region19: #{feed_forward.1} parent=11 // pred_region
          _
        $region20: #{feed_forward.1} parent=11 // pred_fallthru
          _
        // Predicated region
        $region21: #{feed_forward.1} parent=11 // pred_check
          %p185 = pneg %p107
        $region22: #{feed_forward.1} parent=11 // pred_check_branch
          %187 = sbr.rel (%p185) target = $region24
        $region23: #{feed_forward.1} parent=11 // pred_region
          %s189 = ssub.s32 8192, 8192
          %190 = vsyncadd [#allocation6], %s189
          %s191 = sshll.u32 [#allocation7], 4
          %s192 = int_to_ptr.vmem [resolvable:$true] %s191
          %197 = dma.hbm_to_vmem [thread:$0]  %s3, 8192, %s192, [#allocation6], 128, 128, 8
        $region24: #{feed_forward.1} parent=11 // pred_fallthru
          _
        // Predicated region
        $region25: #{feed_forward.1} parent=11 // pred_check
          %p198 = pneg %p128
        $region26: #{feed_forward.1} parent=11 // pred_check_branch
          %200 = sbr.rel (%p198) target = $region28
        $region27: #{feed_forward.1} parent=11 // pred_region
          _
        $region28: #{feed_forward.1} parent=11 // pred_fallthru
          _
      $region12: #{feed_forward.1} parent=5 // pred_fallthru
        _
      %p201 = scmp.lt.s32.totalorder %s18, 2
      // Predicated region
      $region29: #{feed_forward.1} parent=5 // pred_check
        %p202 = pneg %p201
      $region30: #{feed_forward.1} parent=5 // pred_check_branch
        %204 = sbr.rel (%p202) target = $region32
      $region31: #{feed_forward.1} parent=5 // pred_region
        // Predicated region
        $region33: #{feed_forward.1} parent=31 // pred_check
          %p205 = pneg %p38
        $region34: #{feed_forward.1} parent=31 // pred_check_branch
          %207 = sbr.rel (%p205) target = $region36
        $region35: #{feed_forward.1} parent=31 // pred_region
          %s208 = sand.u32 %s28, 1
          %s209 = scalar_lea.sflag [#allocation3], %s208
          %s210 = sand.u32 %s28, 1
          %s211 = smul.addr %s210, 8
          %s212 = scalar_lea.vmem [#allocation2], %s211
          %s214 = ssub.s32 128, 128
          %215 = vsyncadd %s209, %s214
          %s216 = smul.addr %s18, 128
          %s217 = scalar_lea.hbm %s0, %s216
          %s219 = sshll.u32 %s212, 4
          %s220 = int_to_ptr.vmem [resolvable:$true] %s219
          %222 = dma.hbm_to_vmem [thread:$0]  %s217, 128, %s220, %s209
        $region36: #{feed_forward.1} parent=31 // pred_fallthru
          _
      $region32: #{feed_forward.1} parent=5 // pred_fallthru
        _
      %p223 = scmp.le.s32.totalorder 1, %s18
      %p224 = scmp.lt.s32.totalorder %s18, 3
      %p225 = pnand %p223, %p224
      %p226 = pneg %p225
      // Predicated region
      $region37: #{feed_forward.1} parent=5 // pred_check
        _
      $region38: #{feed_forward.1} parent=5 // pred_check_branch
        %228 = sbr.rel (%p225) target = $region40
      $region39: #{feed_forward.1} parent=5 // pred_region
        %s229 = ssub.s32 %s18, 1
        %s230 = sand.u32 %s31, 1
        %s231 = scalar_lea.sflag [#allocation3], %s230
        %s232 = sand.u32 %s31, 1
        %s233 = smul.addr %s232, 8
        %s234 = scalar_lea.vmem [#allocation2], %s233
        // Predicated region
        $region41: #{feed_forward.1} parent=39 // pred_check
          %p235 = pneg %p44
        $region42: #{feed_forward.1} parent=39 // pred_check_branch
          %237 = sbr.rel (%p235) target = $region44
        $region43: #{feed_forward.1} parent=39 // pred_region
          %238 = dma.done %s231, 128
        $region44: #{feed_forward.1} parent=39 // pred_fallthru
          _
        // Predicated region
        $region45: #{feed_forward.1} parent=39 // pred_check
          %p239 = pneg %p65
        $region46: #{feed_forward.1} parent=39 // pred_check_branch
          %241 = sbr.rel (%p239) target = $region48
        $region47: #{feed_forward.1} parent=39 // pred_region
          %242 = dma.done [#allocation6], 8192
        $region48: #{feed_forward.1} parent=39 // pred_fallthru
          _
        // Predicated region
        $region49: #{feed_forward.1} parent=39 // pred_check
          %p243 = pneg %p107
        $region50: #{feed_forward.1} parent=39 // pred_check_branch
          %245 = sbr.rel (%p243) target = $region52
        $region51: #{feed_forward.1} parent=39 // pred_region
          %246 = dma.done [#allocation6], 8192
        $region52: #{feed_forward.1} parent=39 // pred_fallthru
          _
        %s247 = sand.u32 %s31, 1
        %s248 = scalar_lea.sflag [#allocation3], %s247
        %s249 = sand.u32 %s31, 1
        %s250 = smul.addr %s249, 8
        %s251 = scalar_lea.vmem [#allocation2], %s250
        %p252 = pneg %p44
        %p253 = pneg %p41
        %p254 = pneg %p65
        %p255 = pneg %p62
        %p256 = pneg %p86
        %p257 = pneg %p83
        %p258 = pneg %p107
        %p259 = pneg %p104
        %p260 = pneg %p128
        %p261 = pneg %p125
        %p262 = pneg %p154
        %p263 = pneg %p151
        %s264 = sand.u32 %s141, 1
        %s265 = scalar_lea.sflag [#allocation4], %s264
        %s266 = sand.u32 %s141, 1
        %s267 = smul.addr %s266, 8
        %s268 = scalar_lea.vmem [#allocation8], %s267
        %v269 = vld [vmem:[%s234] sm:$0xff]
        %v270 = vld [vmem:[#allocation5] sm:$0xff]
        %v271 = vld [vmem:[#allocation5 + $0x8] sm:$0xff]
        %v272 = vld [vmem:[#allocation5 + $0x10] sm:$0xff]
        %v273 = vld [vmem:[#allocation5 + $0x18] sm:$0xff]
        %v274 = vld [vmem:[#allocation5 + $0x20] sm:$0xff]
        %v275 = vld [vmem:[#allocation5 + $0x28] sm:$0xff]
        %v276 = vld [vmem:[#allocation5 + $0x30] sm:$0xff]
        %v277 = vld [vmem:[#allocation5 + $0x38] sm:$0xff]
        %v278 = vld [vmem:[#allocation5 + $0x40] sm:$0xff]
        %v279 = vld [vmem:[#allocation5 + $0x48] sm:$0xff]
        %v280 = vld [vmem:[#allocation5 + $0x50] sm:$0xff]
        %v281 = vld [vmem:[#allocation5 + $0x58] sm:$0xff]
        %v282 = vld [vmem:[#allocation5 + $0x60] sm:$0xff]
        %v283 = vld [vmem:[#allocation5 + $0x68] sm:$0xff]
        %v284 = vld [vmem:[#allocation5 + $0x70] sm:$0xff]
        %v285 = vld [vmem:[#allocation5 + $0x78] sm:$0xff]
        %v286 = vld [vmem:[#allocation5 + $0x80] sm:$0xff]
        %v287 = vld [vmem:[#allocation5 + $0x88] sm:$0xff]
        %v288 = vld [vmem:[#allocation5 + $0x90] sm:$0xff]
        %v289 = vld [vmem:[#allocation5 + $0x98] sm:$0xff]
        %v290 = vld [vmem:[#allocation5 + $0xa0] sm:$0xff]
        %v291 = vld [vmem:[#allocation5 + $0xa8] sm:$0xff]
        %v292 = vld [vmem:[#allocation5 + $0xb0] sm:$0xff]
        %v293 = vld [vmem:[#allocation5 + $0xb8] sm:$0xff]
        %v294 = vld [vmem:[#allocation5 + $0xc0] sm:$0xff]
        %v295 = vld [vmem:[#allocation5 + $0xc8] sm:$0xff]
        %v296 = vld [vmem:[#allocation5 + $0xd0] sm:$0xff]
        %v297 = vld [vmem:[#allocation5 + $0xd8] sm:$0xff]
        %v298 = vld [vmem:[#allocation5 + $0xe0] sm:$0xff]
        %v299 = vld [vmem:[#allocation5 + $0xe8] sm:$0xff]
        %v300 = vld [vmem:[#allocation5 + $0xf0] sm:$0xff]
        %v301 = vld [vmem:[#allocation5 + $0xf8] sm:$0xff]
        %v302 = vld [vmem:[#allocation5 + $0x100] sm:$0xff]
        %v303 = vld [vmem:[#allocation5 + $0x108] sm:$0xff]
        %v304 = vld [vmem:[#allocation5 + $0x110] sm:$0xff]
        %v305 = vld [vmem:[#allocation5 + $0x118] sm:$0xff]
        %v306 = vld [vmem:[#allocation5 + $0x120] sm:$0xff]
        %v307 = vld [vmem:[#allocation5 + $0x128] sm:$0xff]
        %v308 = vld [vmem:[#allocation5 + $0x130] sm:$0xff]
        %v309 = vld [vmem:[#allocation5 + $0x138] sm:$0xff]
        %v310 = vld [vmem:[#allocation5 + $0x140] sm:$0xff]
        %v311 = vld [vmem:[#allocation5 + $0x148] sm:$0xff]
        %v312 = vld [vmem:[#allocation5 + $0x150] sm:$0xff]
        %v313 = vld [vmem:[#allocation5 + $0x158] sm:$0xff]
        %v314 = vld [vmem:[#allocation5 + $0x160] sm:$0xff]
        %v315 = vld [vmem:[#allocation5 + $0x168] sm:$0xff]
        %v316 = vld [vmem:[#allocation5 + $0x170] sm:$0xff]
        %v317 = vld [vmem:[#allocation5 + $0x178] sm:$0xff]
        %v318 = vld [vmem:[#allocation5 + $0x180] sm:$0xff]
        %v319 = vld [vmem:[#allocation5 + $0x188] sm:$0xff]
        %v320 = vld [vmem:[#allocation5 + $0x190] sm:$0xff]
        %v321 = vld [vmem:[#allocation5 + $0x198] sm:$0xff]
        %v322 = vld [vmem:[#allocation5 + $0x1a0] sm:$0xff]
        %v323 = vld [vmem:[#allocation5 + $0x1a8] sm:$0xff]
        %v324 = vld [vmem:[#allocation5 + $0x1b0] sm:$0xff]
        %v325 = vld [vmem:[#allocation5 + $0x1b8] sm:$0xff]
        %v326 = vld [vmem:[#allocation5 + $0x1c0] sm:$0xff]
        %v327 = vld [vmem:[#allocation5 + $0x1c8] sm:$0xff]
        %v328 = vld [vmem:[#allocation5 + $0x1d0] sm:$0xff]
        %v329 = vld [vmem:[#allocation5 + $0x1d8] sm:$0xff]
        %v330 = vld [vmem:[#allocation5 + $0x1e0] sm:$0xff]
        %v331 = vld [vmem:[#allocation5 + $0x1e8] sm:$0xff]
        %v332 = vld [vmem:[#allocation5 + $0x1f0] sm:$0xff]
        %v333 = vld [vmem:[#allocation5 + $0x1f8] sm:$0xff]
        %v334 = vld [vmem:[%s2] sm:$0xf]
        %v336 = vlaneseq
        %v337 = vshrl.u32 %v336, 7
        %v338 = vsub.s32 0, %v337
        %v339 = vrot.slane %v334, %v338
        %v340 = vlaneseq
        %v341 = vshrl.u32 %v340, 7
        %v342 = vsub.s32 1, %v341
        %v343 = vrot.slane %v334, %v342
        %v344 = vlaneseq
        %v345 = vshrl.u32 %v344, 7
        %v346 = vsub.s32 2, %v345
        %v347 = vrot.slane %v334, %v346
        %v348 = vlaneseq
        %v349 = vshrl.u32 %v348, 7
        %v350 = vsub.s32 3, %v349
        %v351 = vrot.slane %v334, %v350
        %356 = vmatprep.subr.mxu0 %v271
        %357 = vmatpush1.msra.mxu0 %v270
        %358 = vmatprep.subr.mxu0 %v275
        %359 = vmatpush1.msra.mxu0 %v274
        %360 = vmatprep.subr.mxu0 %v279
        %361 = vmatpush1.msra.mxu0 %v278
        %362 = vmatprep.subr.mxu0 %v283
        %363 = vmatpush1.msra.mxu0 %v282
        %364 = vmatprep.subr.mxu0 %v287
        %365 = vmatpush1.msra.mxu0 %v286
        %366 = vmatprep.subr.mxu0 %v291
        %367 = vmatpush1.msra.mxu0 %v290
        %368 = vmatprep.subr.mxu0 %v295
        %369 = vmatpush1.msra.mxu0 %v294
        %370 = vmatprep.subr.mxu0 %v299
        %371 = vmatpush1.msra.mxu0 %v298
        %372 = vmatprep.subr.mxu0 %v303
        %373 = vmatpush1.msra.mxu0 %v302
        %374 = vmatprep.subr.mxu0 %v307
        %375 = vmatpush1.msra.mxu0 %v306
        %376 = vmatprep.subr.mxu0 %v311
        %377 = vmatpush1.msra.mxu0 %v310
        %378 = vmatprep.subr.mxu0 %v315
        %379 = vmatpush1.msra.mxu0 %v314
        %380 = vmatprep.subr.mxu0 %v319
        %381 = vmatpush1.msra.mxu0 %v318
        %382 = vmatprep.subr.mxu0 %v323
        %383 = vmatpush1.msra.mxu0 %v322
        %384 = vmatprep.subr.mxu0 %v327
        %385 = vmatpush1.msra.mxu0 %v326
        %386 = vmatprep.subr.mxu0 %v331
        %387 = vmatpush1.msra.mxu0 %v330
        %388 = vmatprep.subr.mxu0 0.0
        %389 = vmatpush1.msra.mxu0 0.0
        %390 = vmatprep.subr.mxu0 0.0
        %391 = vmatpush1.msra.mxu0 0.0
        %392 = vmatprep.subr.mxu0 0.0
        %393 = vmatpush1.msra.mxu0 0.0
        %394 = vmatprep.subr.mxu0 0.0
        %395 = vmatpush1.msra.mxu0 0.0
        %396 = vmatprep.subr.mxu0 0.0
        %397 = vmatpush1.msra.mxu0 0.0
        %398 = vmatprep.subr.mxu0 0.0
        %399 = vmatpush1.msra.mxu0 0.0
        %400 = vmatprep.subr.mxu0 0.0
        %401 = vmatpush1.msra.mxu0 0.0
        %402 = vmatprep.subr.mxu0 0.0
        %403 = vmatpush1.msra.mxu0 0.0
        %404 = vmatprep.subr.mxu0 0.0
        %405 = vmatpush1.msra.mxu0 0.0
        %406 = vmatprep.subr.mxu0 0.0
        %407 = vmatpush1.msra.mxu0 0.0
        %408 = vmatprep.subr.mxu0 0.0
        %409 = vmatpush1.msra.mxu0 0.0
        %410 = vmatprep.subr.mxu0 0.0
        %411 = vmatpush1.msra.mxu0 0.0
        %412 = vmatprep.subr.mxu0 0.0
        %413 = vmatpush1.msra.mxu0 0.0
        %414 = vmatprep.subr.mxu0 0.0
        %415 = vmatpush1.msra.mxu0 0.0
        %416 = vmatprep.subr.mxu0 0.0
        %417 = vmatpush1.msra.mxu0 0.0
        %418 = vmatprep.subr.mxu0 0.0
        %419 = vmatpush1.msra.mxu0 0.0
        %420 = vmatprep.mubr.f32.mxu0 0.0
        %421 = vmatmul.mubr.f32.gmra.mrb[0].mxu0 %v269
        %v422 = vpop.f32.mrb[0].mxu0
        %v423 = vadd.f32 %v339, %v422
        %v424 = vpop.f32.mrb[0].mxu0
        %v425 = vadd.f32 %v343, %v424
        %426 = vdwg.mxu0
        %427 = vmatprep.subr.mxu0 %v273
        %428 = vmatpush1.msra.mxu0 %v272
        %429 = vmatprep.subr.mxu0 %v277
        %430 = vmatpush1.msra.mxu0 %v276
        %431 = vmatprep.subr.mxu0 %v281
        %432 = vmatpush1.msra.mxu0 %v280
        %433 = vmatprep.subr.mxu0 %v285
        %434 = vmatpush1.msra.mxu0 %v284
        %435 = vmatprep.subr.mxu0 %v289
        %436 = vmatpush1.msra.mxu0 %v288
        %437 = vmatprep.subr.mxu0 %v293
        %438 = vmatpush1.msra.mxu0 %v292
        %439 = vmatprep.subr.mxu0 %v297
        %440 = vmatpush1.msra.mxu0 %v296
        %441 = vmatprep.subr.mxu0 %v301
        %442 = vmatpush1.msra.mxu0 %v300
        %443 = vmatprep.subr.mxu0 %v305
        %444 = vmatpush1.msra.mxu0 %v304
        %445 = vmatprep.subr.mxu0 %v309
        %446 = vmatpush1.msra.mxu0 %v308
        %447 = vmatprep.subr.mxu0 %v313
        %448 = vmatpush1.msra.mxu0 %v312
        %449 = vmatprep.subr.mxu0 %v317
        %450 = vmatpush1.msra.mxu0 %v316
        %451 = vmatprep.subr.mxu0 %v321
        %452 = vmatpush1.msra.mxu0 %v320
        %453 = vmatprep.subr.mxu0 %v325
        %454 = vmatpush1.msra.mxu0 %v324
        %455 = vmatprep.subr.mxu0 %v329
        %456 = vmatpush1.msra.mxu0 %v328
        %457 = vmatprep.subr.mxu0 %v333
        %458 = vmatpush1.msra.mxu0 %v332
        %459 = vmatprep.subr.mxu0 0.0
        %460 = vmatpush1.msra.mxu0 0.0
        %461 = vmatprep.subr.mxu0 0.0
        %462 = vmatpush1.msra.mxu0 0.0
        %463 = vmatprep.subr.mxu0 0.0
        %464 = vmatpush1.msra.mxu0 0.0
        %465 = vmatprep.subr.mxu0 0.0
        %466 = vmatpush1.msra.mxu0 0.0
        %467 = vmatprep.subr.mxu0 0.0
        %468 = vmatpush1.msra.mxu0 0.0
        %469 = vmatprep.subr.mxu0 0.0
        %470 = vmatpush1.msra.mxu0 0.0
        %471 = vmatprep.subr.mxu0 0.0
        %472 = vmatpush1.msra.mxu0 0.0
        %473 = vmatprep.subr.mxu0 0.0
        %474 = vmatpush1.msra.mxu0 0.0
        %475 = vmatprep.subr.mxu0 0.0
        %476 = vmatpush1.msra.mxu0 0.0
        %477 = vmatprep.subr.mxu0 0.0
        %478 = vmatpush1.msra.mxu0 0.0
        %479 = vmatprep.subr.mxu0 0.0
        %480 = vmatpush1.msra.mxu0 0.0
        %481 = vmatprep.subr.mxu0 0.0
        %482 = vmatpush1.msra.mxu0 0.0
        %483 = vmatprep.subr.mxu0 0.0
        %484 = vmatpush1.msra.mxu0 0.0
        %485 = vmatprep.subr.mxu0 0.0
        %486 = vmatpush1.msra.mxu0 0.0
        %487 = vmatprep.subr.mxu0 0.0
        %488 = vmatpush1.msra.mxu0 0.0
        %489 = vmatprep.subr.mxu0 0.0
        %490 = vmatpush1.msra.mxu0 0.0
        %491 = vmatprep.mubr.f32.mxu0 0.0
        %492 = vmatmul.mubr.f32.gmra.mrb[0].mxu0 %v269
        %v493 = vpop.f32.mrb[0].mxu0
        %v494 = vadd.f32 %v347, %v493
        %v495 = vpop.f32.mrb[0].mxu0
        %v496 = vadd.f32 %v351, %v495
        %497 = vdwg.mxu0
        %v498 = vxor.u32 %v423, 2147483648
        %v499 = vxor.u32 %v425, 2147483648
        %v500 = vxor.u32 %v494, 2147483648
        %v501 = vxor.u32 %v496, 2147483648
        %v502 = vmul.f32 %v498, 1.442695
        %v503 = vpow.pop %v502
        %v504 = vmul.f32 %v499, 1.442695
        %v505 = vpow.pop %v504
        %v506 = vmul.f32 %v500, 1.442695
        %v507 = vpow.pop %v506
        %v508 = vmul.f32 %v501, 1.442695
        %v509 = vpow.pop %v508
        %v510 = vadd.f32 %v503, 1.0
        %v511 = vadd.f32 %v505, 1.0
        %v512 = vadd.f32 %v507, 1.0
        %v513 = vadd.f32 %v509, 1.0
        %v514 = vrcp.pop %v510
        %v515 = vmul.f32 1.0, %v514
        %v516 = vrcp.pop %v511
        %v517 = vmul.f32 1.0, %v516
        %v518 = vrcp.pop %v512
        %v519 = vmul.f32 1.0, %v518
        %v520 = vrcp.pop %v513
        %v521 = vmul.f32 1.0, %v520
        %v522 = vmul.f32 %v423, %v515
        %v523 = vmul.f32 %v425, %v517
        %v524 = vmul.f32 %v494, %v519
        %v525 = vmul.f32 %v496, %v521
        %v526 = vld [vmem:[#allocation7] sm:$0xff]
        %v527 = vld [vmem:[#allocation7 + $0x8] sm:$0xff]
        %v528 = vld [vmem:[#allocation7 + $0x10] sm:$0xff]
        %v529 = vld [vmem:[#allocation7 + $0x18] sm:$0xff]
        %v530 = vld [vmem:[#allocation7 + $0x20] sm:$0xff]
        %v531 = vld [vmem:[#allocation7 + $0x28] sm:$0xff]
        %v532 = vld [vmem:[#allocation7 + $0x30] sm:$0xff]
        %v533 = vld [vmem:[#allocation7 + $0x38] sm:$0xff]
        %v534 = vld [vmem:[#allocation7 + $0x40] sm:$0xff]
        %v535 = vld [vmem:[#allocation7 + $0x48] sm:$0xff]
        %v536 = vld [vmem:[#allocation7 + $0x50] sm:$0xff]
        %v537 = vld [vmem:[#allocation7 + $0x58] sm:$0xff]
        %v538 = vld [vmem:[#allocation7 + $0x60] sm:$0xff]
        %v539 = vld [vmem:[#allocation7 + $0x68] sm:$0xff]
        %v540 = vld [vmem:[#allocation7 + $0x70] sm:$0xff]
        %v541 = vld [vmem:[#allocation7 + $0x78] sm:$0xff]
        %v542 = vld [vmem:[#allocation7 + $0x80] sm:$0xff]
        %v543 = vld [vmem:[#allocation7 + $0x88] sm:$0xff]
        %v544 = vld [vmem:[#allocation7 + $0x90] sm:$0xff]
        %v545 = vld [vmem:[#allocation7 + $0x98] sm:$0xff]
        %v546 = vld [vmem:[#allocation7 + $0xa0] sm:$0xff]
        %v547 = vld [vmem:[#allocation7 + $0xa8] sm:$0xff]
        %v548 = vld [vmem:[#allocation7 + $0xb0] sm:$0xff]
        %v549 = vld [vmem:[#allocation7 + $0xb8] sm:$0xff]
        %v550 = vld [vmem:[#allocation7 + $0xc0] sm:$0xff]
        %v551 = vld [vmem:[#allocation7 + $0xc8] sm:$0xff]
        %v552 = vld [vmem:[#allocation7 + $0xd0] sm:$0xff]
        %v553 = vld [vmem:[#allocation7 + $0xd8] sm:$0xff]
        %v554 = vld [vmem:[#allocation7 + $0xe0] sm:$0xff]
        %v555 = vld [vmem:[#allocation7 + $0xe8] sm:$0xff]
        %v556 = vld [vmem:[#allocation7 + $0xf0] sm:$0xff]
        %v557 = vld [vmem:[#allocation7 + $0xf8] sm:$0xff]
        %v558 = vld [vmem:[#allocation7 + $0x100] sm:$0xff]
        %v559 = vld [vmem:[#allocation7 + $0x108] sm:$0xff]
        %v560 = vld [vmem:[#allocation7 + $0x110] sm:$0xff]
        %v561 = vld [vmem:[#allocation7 + $0x118] sm:$0xff]
        %v562 = vld [vmem:[#allocation7 + $0x120] sm:$0xff]
        %v563 = vld [vmem:[#allocation7 + $0x128] sm:$0xff]
        %v564 = vld [vmem:[#allocation7 + $0x130] sm:$0xff]
        %v565 = vld [vmem:[#allocation7 + $0x138] sm:$0xff]
        %v566 = vld [vmem:[#allocation7 + $0x140] sm:$0xff]
        %v567 = vld [vmem:[#allocation7 + $0x148] sm:$0xff]
        %v568 = vld [vmem:[#allocation7 + $0x150] sm:$0xff]
        %v569 = vld [vmem:[#allocation7 + $0x158] sm:$0xff]
        %v570 = vld [vmem:[#allocation7 + $0x160] sm:$0xff]
        %v571 = vld [vmem:[#allocation7 + $0x168] sm:$0xff]
        %v572 = vld [vmem:[#allocation7 + $0x170] sm:$0xff]
        %v573 = vld [vmem:[#allocation7 + $0x178] sm:$0xff]
        %v574 = vld [vmem:[#allocation7 + $0x180] sm:$0xff]
        %v575 = vld [vmem:[#allocation7 + $0x188] sm:$0xff]
        %v576 = vld [vmem:[#allocation7 + $0x190] sm:$0xff]
        %v577 = vld [vmem:[#allocation7 + $0x198] sm:$0xff]
        %v578 = vld [vmem:[#allocation7 + $0x1a0] sm:$0xff]
        %v579 = vld [vmem:[#allocation7 + $0x1a8] sm:$0xff]
        %v580 = vld [vmem:[#allocation7 + $0x1b0] sm:$0xff]
        %v581 = vld [vmem:[#allocation7 + $0x1b8] sm:$0xff]
        %v582 = vld [vmem:[#allocation7 + $0x1c0] sm:$0xff]
        %v583 = vld [vmem:[#allocation7 + $0x1c8] sm:$0xff]
        %v584 = vld [vmem:[#allocation7 + $0x1d0] sm:$0xff]
        %v585 = vld [vmem:[#allocation7 + $0x1d8] sm:$0xff]
        %v586 = vld [vmem:[#allocation7 + $0x1e0] sm:$0xff]
        %v587 = vld [vmem:[#allocation7 + $0x1e8] sm:$0xff]
        %v588 = vld [vmem:[#allocation7 + $0x1f0] sm:$0xff]
        %v589 = vld [vmem:[#allocation7 + $0x1f8] sm:$0xff]
        %v590 = vld [vmem:[%s4] sm:$0x1]
        %v592 = vlaneseq
        %v593 = vshrl.u32 %v592, 7
        %v594 = vsub.s32 0, %v593
        %v595 = vrot.slane %v590, %v594
        %597 = vmatprep.subr.mxu0 0.0
        %598 = vmatpush1.msra.mxu0 %v526
        %599 = vmatprep.subr.mxu0 0.0
        %600 = vmatpush1.msra.mxu0 %v527
        %601 = vmatprep.subr.mxu0 0.0
        %602 = vmatpush1.msra.mxu0 %v528
        %603 = vmatprep.subr.mxu0 0.0
        %604 = vmatpush1.msra.mxu0 %v529
        %605 = vmatprep.subr.mxu0 0.0
        %606 = vmatpush1.msra.mxu0 %v530
        %607 = vmatprep.subr.mxu0 0.0
        %608 = vmatpush1.msra.mxu0 %v531
        %609 = vmatprep.subr.mxu0 0.0
        %610 = vmatpush1.msra.mxu0 %v532
        %611 = vmatprep.subr.mxu0 0.0
        %612 = vmatpush1.msra.mxu0 %v533
        %613 = vmatprep.subr.mxu0 0.0
        %614 = vmatpush1.msra.mxu0 %v534
        %615 = vmatprep.subr.mxu0 0.0
        %616 = vmatpush1.msra.mxu0 %v535
        %617 = vmatprep.subr.mxu0 0.0
        %618 = vmatpush1.msra.mxu0 %v536
        %619 = vmatprep.subr.mxu0 0.0
        %620 = vmatpush1.msra.mxu0 %v537
        %621 = vmatprep.subr.mxu0 0.0
        %622 = vmatpush1.msra.mxu0 %v538
        %623 = vmatprep.subr.mxu0 0.0
        %624 = vmatpush1.msra.mxu0 %v539
        %625 = vmatprep.subr.mxu0 0.0
        %626 = vmatpush1.msra.mxu0 %v540
        %627 = vmatprep.subr.mxu0 0.0
        %628 = vmatpush1.msra.mxu0 %v541
        %629 = vmatprep.subr.mxu0 0.0
        %630 = vmatpush1.msra.mxu0 %v542
        %631 = vmatprep.subr.mxu0 0.0
        %632 = vmatpush1.msra.mxu0 %v543
        %633 = vmatprep.subr.mxu0 0.0
        %634 = vmatpush1.msra.mxu0 %v544
        %635 = vmatprep.subr.mxu0 0.0
        %636 = vmatpush1.msra.mxu0 %v545
        %637 = vmatprep.subr.mxu0 0.0
        %638 = vmatpush1.msra.mxu0 %v546
        %639 = vmatprep.subr.mxu0 0.0
        %640 = vmatpush1.msra.mxu0 %v547
        %641 = vmatprep.subr.mxu0 0.0
        %642 = vmatpush1.msra.mxu0 %v548
        %643 = vmatprep.subr.mxu0 0.0
        %644 = vmatpush1.msra.mxu0 %v549
        %645 = vmatprep.subr.mxu0 0.0
        %646 = vmatpush1.msra.mxu0 %v550
        %647 = vmatprep.subr.mxu0 0.0
        %648 = vmatpush1.msra.mxu0 %v551
        %649 = vmatprep.subr.mxu0 0.0
        %650 = vmatpush1.msra.mxu0 %v552
        %651 = vmatprep.subr.mxu0 0.0
        %652 = vmatpush1.msra.mxu0 %v553
        %653 = vmatprep.subr.mxu0 0.0
        %654 = vmatpush1.msra.mxu0 %v554
        %655 = vmatprep.subr.mxu0 0.0
        %656 = vmatpush1.msra.mxu0 %v555
        %657 = vmatprep.subr.mxu0 0.0
        %658 = vmatpush1.msra.mxu0 %v556
        %659 = vmatprep.subr.mxu0 0.0
        %660 = vmatpush1.msra.mxu0 %v557
        %661 = vmatprep.mubr.f32.mxu0 %v523
        %662 = vmatmul.mubr.f32.gmra.mrb[0].mxu0 %v522
        %v663 = vpop.f32.mrb[0].mxu0
        %v664 = vadd.f32 %v595, %v663
        %v665 = vpop.f32.mrb[0].mxu0
        %666 = vdwg.mxu0
        %667 = vmatprep.subr.mxu0 0.0
        %668 = vmatpush1.msra.mxu0 %v558
        %669 = vmatprep.subr.mxu0 0.0
        %670 = vmatpush1.msra.mxu0 %v559
        %671 = vmatprep.subr.mxu0 0.0
        %672 = vmatpush1.msra.mxu0 %v560
        %673 = vmatprep.subr.mxu0 0.0
        %674 = vmatpush1.msra.mxu0 %v561
        %675 = vmatprep.subr.mxu0 0.0
        %676 = vmatpush1.msra.mxu0 %v562
        %677 = vmatprep.subr.mxu0 0.0
        %678 = vmatpush1.msra.mxu0 %v563
        %679 = vmatprep.subr.mxu0 0.0
        %680 = vmatpush1.msra.mxu0 %v564
        %681 = vmatprep.subr.mxu0 0.0
        %682 = vmatpush1.msra.mxu0 %v565
        %683 = vmatprep.subr.mxu0 0.0
        %684 = vmatpush1.msra.mxu0 %v566
        %685 = vmatprep.subr.mxu0 0.0
        %686 = vmatpush1.msra.mxu0 %v567
        %687 = vmatprep.subr.mxu0 0.0
        %688 = vmatpush1.msra.mxu0 %v568
        %689 = vmatprep.subr.mxu0 0.0
        %690 = vmatpush1.msra.mxu0 %v569
        %691 = vmatprep.subr.mxu0 0.0
        %692 = vmatpush1.msra.mxu0 %v570
        %693 = vmatprep.subr.mxu0 0.0
        %694 = vmatpush1.msra.mxu0 %v571
        %695 = vmatprep.subr.mxu0 0.0
        %696 = vmatpush1.msra.mxu0 %v572
        %697 = vmatprep.subr.mxu0 0.0
        %698 = vmatpush1.msra.mxu0 %v573
        %699 = vmatprep.subr.mxu0 0.0
        %700 = vmatpush1.msra.mxu0 %v574
        %701 = vmatprep.subr.mxu0 0.0
        %702 = vmatpush1.msra.mxu0 %v575
        %703 = vmatprep.subr.mxu0 0.0
        %704 = vmatpush1.msra.mxu0 %v576
        %705 = vmatprep.subr.mxu0 0.0
        %706 = vmatpush1.msra.mxu0 %v577
        %707 = vmatprep.subr.mxu0 0.0
        %708 = vmatpush1.msra.mxu0 %v578
        %709 = vmatprep.subr.mxu0 0.0
        %710 = vmatpush1.msra.mxu0 %v579
        %711 = vmatprep.subr.mxu0 0.0
        %712 = vmatpush1.msra.mxu0 %v580
        %713 = vmatprep.subr.mxu0 0.0
        %714 = vmatpush1.msra.mxu0 %v581
        %715 = vmatprep.subr.mxu0 0.0
        %716 = vmatpush1.msra.mxu0 %v582
        %717 = vmatprep.subr.mxu0 0.0
        %718 = vmatpush1.msra.mxu0 %v583
        %719 = vmatprep.subr.mxu0 0.0
        %720 = vmatpush1.msra.mxu0 %v584
        %721 = vmatprep.subr.mxu0 0.0
        %722 = vmatpush1.msra.mxu0 %v585
        %723 = vmatprep.subr.mxu0 0.0
        %724 = vmatpush1.msra.mxu0 %v586
        %725 = vmatprep.subr.mxu0 0.0
        %726 = vmatpush1.msra.mxu0 %v587
        %727 = vmatprep.subr.mxu0 0.0
        %728 = vmatpush1.msra.mxu0 %v588
        %729 = vmatprep.subr.mxu0 0.0
        %730 = vmatpush1.msra.mxu0 %v589
        %731 = vmatprep.mubr.f32.mxu0 %v525
        %732 = vmatmul.mubr.f32.gmra.mrb[0].mxu0 %v524
        %v733 = vpop.f32.mrb[0].mxu0
        %v734 = vadd.f32 %v664, %v733
        %v735 = vpop.f32.mrb[0].mxu0
        %736 = vdwg.mxu0
        %737 = vst [vmem:[%s268] sm:$0xff] %v734
        %s738 = sand.u32 %s141, 1
        %s739 = scalar_lea.sflag [#allocation4], %s738
        %s740 = sand.u32 %s141, 1
        %s741 = smul.addr %s740, 8
        %s742 = scalar_lea.vmem [#allocation8], %s741
        // Predicated region
        $region53: #{feed_forward.1} parent=39 // pred_check
          %p743 = pneg %p151
        $region54: #{feed_forward.1} parent=39 // pred_check_branch
          %745 = sbr.rel (%p743) target = $region56
        $region55: #{feed_forward.1} parent=39 // pred_region
          %s747 = ssub.s32 128, 128
          %748 = vsyncadd %s739, %s747
          %s749 = smul.addr %s23, 128
          %s750 = scalar_lea.hbm %s5, %s749
          %s752 = sshll.u32 %s742, 4
          %s753 = int_to_ptr.vmem [resolvable:$true] %s752
          %755 = dma.vmem_to_hbm [thread:$0]  %s753, 128, %s750, %s739
        $region56: #{feed_forward.1} parent=39 // pred_fallthru
          _
      $region40: #{feed_forward.1} parent=5 // pred_fallthru
        _
      %p756 = scmp.le.s32.totalorder 2, %s18
      // Predicated region
      $region57: #{feed_forward.1} parent=5 // pred_check
        %p757 = pneg %p756
      $region58: #{feed_forward.1} parent=5 // pred_check_branch
        %759 = sbr.rel (%p757) target = $region60
      $region59: #{feed_forward.1} parent=5 // pred_region
        %s760 = ssub.s32 %s18, 2
        // Predicated region
        $region61: #{feed_forward.1} parent=59 // pred_check
          %p761 = pneg %p157
        $region62: #{feed_forward.1} parent=59 // pred_check_branch
          %763 = sbr.rel (%p761) target = $region64
        $region63: #{feed_forward.1} parent=59 // pred_region
          %s764 = sand.u32 %s142, 1
          %s765 = scalar_lea.sflag [#allocation4], %s764
          %s766 = sand.u32 %s142, 1
          %s767 = smul.addr %s766, 8
          %s768 = scalar_lea.vmem [#allocation8], %s767
          %769 = dma.done %s765, 128
        $region64: #{feed_forward.1} parent=59 // pred_fallthru
          _
      $region60: #{feed_forward.1} parent=5 // pred_fallthru
        _
    $region6: #{feed_forward.1} parent=1 // loop_footer
      %s22 = sadd.s32 1, %s18
    $region7: #{feed_forward.1} parent=1 // loop_footer_branch
      %17 = sbr.rel target = $region3
    $region8: #{feed_forward.1} parent=1 // loop_exit
      _
    %770 = vsyncpa [#allocation3], 1
    %s771 = scalar_lea.sflag [#allocation3], 1
    %772 = vsyncpa %s771, 1
    %773 = vsyncpa [#allocation6], 1
    %774 = vsyncpa [#allocation4], 1
    %s775 = scalar_lea.sflag [#allocation4], 1
    %776 = vsyncpa %s775, 1

</llo_original>
